<compile_context>
chip_gen: v5e
topology: v5e:2x2
jax: 0.10.0
libtpu: 0.0.40
codegen_flags: <defaults>
</compile_context>

<pallas_src>
import jax
import jax.numpy as jnp
from jax.experimental import pallas as pl
from jax.experimental.pallas import tpu as pltpu


def _swiglu2_kernel(x_ref, o_ref):
    x = x_ref[...]
    # Compute in f32 for accuracy; DMA stays the bottleneck.
    xf = x.astype(jnp.float32)
    # sigmoid via a single EUP transcendental (tanh) instead of exp+divide.
    sig = 0.5 + 0.5 * jnp.tanh(0.5 * xf)
    # TODO(synk): on v7x, if the bundle dump shows the EUP slot co-saturating
    #   for bf16/fp8 inputs, evaluate the bf16 tanh path (bf16 EUP) with only
    #   the final multiplies in f32.
    o_ref[...] = (xf * xf * sig).astype(o_ref.dtype)   # silu(x) * x


def _cdiv(a: int, b: int) -> int:
    return -(-a // b)


def _target_block_bytes() -> int:
    """~4 MiB blocks on v6e/v7x (32 MiB scoped default), ~2 MiB on v5 parts
    (16 MiB scoped default)."""
    try:
        kind = jax.devices()[0].device_kind.lower()
    except Exception:
        kind = ""
    if "v5" in kind:
        return 2 * 1024 * 1024
    return 4 * 1024 * 1024


_MIN_BYTES_FOR_MULTI_STEP = 256 * 1024   # below this a 1-step grid is fine


def _choose_block_rows(rows: int, lanes: int, itemsize: int,
                       target_bytes: int) -> tuple[int, int]:
    """Pick block rows: big, sublane(8)-aligned, and for non-trivial inputs
    an even number (>=2) of grid steps so v7x's two TCs are load-balanced."""
    tm = target_bytes // (lanes * itemsize)
    tm = max(8, (tm // 8) * 8)
    if tm >= rows:
        tm = rows                       # single block == full array dims (legal)
    steps = _cdiv(rows, tm)

    total_bytes = rows * lanes * itemsize
    if total_bytes > _MIN_BYTES_FOR_MULTI_STEP and (steps < 2 or steps % 2 == 1):
        want = 2 if steps < 2 else steps + 1
        cand = max(8, _cdiv(_cdiv(rows, want), 8) * 8)
        cand_steps = _cdiv(rows, cand)
        # Accept if it yields an even split, or at least >=2 steps when we
        # previously had only one.
        if cand_steps >= 2 and (cand_steps % 2 == 0 or steps < 2):
            tm, steps = cand, cand_steps
    return tm, steps


def _swiglu2_2d(x2d: jax.Array, donate_input: bool = False) -> jax.Array:
    """Run the kernel on a lane-dense (rows, lanes) slab."""
    rows, lanes = x2d.shape
    itemsize = jnp.dtype(x2d.dtype).itemsize
    tm, steps = _choose_block_rows(rows, lanes, itemsize, _target_block_bytes())

    block_bytes = tm * lanes * itemsize
    # Double-buffered input + output, plus headroom; generous but well under
    # every generation's physical VMEM.
    vmem_limit = min(max(4 * block_bytes + (4 << 20), 16 << 20), 48 << 20)

    n = rows * lanes
    cost = pl.CostEstimate(
        flops=3 * n,
        transcendentals=n,
        bytes_accessed=2 * n * itemsize,
    )

    kwargs = {}
    if donate_input:
        # Only sound if the caller actually donates x (e.g. jit donate_argnums);
        # otherwise XLA inserts a defensive copy, so keep it opt-in.
        kwargs["input_output_aliases"] = {0: 0}

    return pl.pallas_call(
        _swiglu2_kernel,
        out_shape=jax.ShapeDtypeStruct((rows, lanes), x2d.dtype),
        grid_spec=pltpu.PrefetchScalarGridSpec(
            num_scalar_prefetch=0,
            grid=(steps,),
            in_specs=[pl.BlockSpec((tm, lanes), lambda i: (i, 0))],
            out_specs=pl.BlockSpec((tm, lanes), lambda i: (i, 0)),
        ),
        compiler_params=pltpu.CompilerParams(
            dimension_semantics=("parallel",),
            vmem_limit_bytes=vmem_limit,
        ),
        cost_estimate=cost,
        **kwargs,
    )(x2d)


def _silu_times_x_jnp(x: jax.Array) -> jax.Array:
    xf = x.astype(jnp.float32)
    return (xf * xf * (0.5 + 0.5 * jnp.tanh(0.5 * xf))).astype(x.dtype)


def swiglu2(x: jax.Array, donate_input: bool = False) -> jax.Array:
    """Elementwise silu(x) * x via a Pallas TPU kernel (floating dtypes)."""
    orig_shape = x.shape
    orig_dtype = x.dtype
    if not jnp.issubdtype(orig_dtype, jnp.floating):
        raise TypeError(f"swiglu2 expects a floating dtype, got {orig_dtype}")
    n = x.size
    if n == 0:
        return x

    # Widest lane-dense last dim that divides n exactly -> the reshape to a
    # 2-D slab is a free bitcast and stores are unmasked lane-dense vst.
    lanes = None
    for cand in (1024, 512, 256, 128):
        if n % cand == 0:
            lanes = cand
            break

    if lanes is not None:
        out2d = _swiglu2_2d(x.reshape(n // lanes, lanes), donate_input)
        return out2d.reshape(orig_shape)

    # Ragged fallback: run the kernel on the lane-aligned prefix only and
    # handle the <128-element tail with plain jnp (no full-array pad/slice).
    lanes = 128
    x_flat = x.reshape(-1)
    n_main = (n // lanes) * lanes
    if n_main == 0:
        return _silu_times_x_jnp(x_flat).reshape(orig_shape)

    out_main = _swiglu2_2d(x_flat[:n_main].reshape(n_main // lanes, lanes),
                           donate_input=False).reshape(-1)
    out_tail = _silu_times_x_jnp(x_flat[n_main:])
    return jnp.concatenate([out_main, out_tail]).reshape(orig_shape)


def swiglu2_ref(x: jax.Array) -> jax.Array:
    xf = x.astype(jnp.float32)
    return (xf * jax.nn.sigmoid(xf) * xf).astype(x.dtype)


if __name__ == "__main__":
    key = jax.random.PRNGKey(0)

    # NCHW input, matching the torch module's conv-style convention.
    x = jax.random.normal(key, (2, 4, 16, 16), dtype=jnp.float32)
    out = jax.block_until_ready(swiglu2(x))
    ref = swiglu2_ref(x)
    assert out.shape == x.shape and out.dtype == x.dtype
    assert jnp.allclose(out, ref, atol=1e-5, rtol=1e-5)

    # Small ragged bf16 input exercises the prefix + tail fallback + packing.
    x2 = jax.random.normal(jax.random.PRNGKey(1), (2, 3, 17, 19),
                           dtype=jnp.bfloat16)
    out2 = jax.block_until_ready(swiglu2(x2))
    ref2 = swiglu2_ref(x2)
    assert out2.shape == x2.shape and out2.dtype == x2.dtype
    assert jnp.allclose(out2.astype(jnp.float32), ref2.astype(jnp.float32),
                        atol=2e-2, rtol=2e-2)

    # Mid-size f32 input exercises the multi-step (even) grid path.
    x3 = jax.random.normal(jax.random.PRNGKey(2), (2, 8, 128, 128),
                           dtype=jnp.float32)
    out3 = jax.block_until_ready(swiglu2(x3))
    ref3 = swiglu2_ref(x3)
    assert out3.shape == x3.shape and out3.dtype == x3.dtype
    assert jnp.allclose(out3, ref3, atol=1e-5, rtol=1e-5)

    print("KERNEL_OK")
</pallas_src>

<mosaic_0001>
module attributes {stable_mosaic.version = 11 : i64} {
  func.func @_swiglu2_kernel(%arg0: i32, %arg1: memref<2x1024xf32, #tpu.memory_space<vmem>>, %arg2: memref<2x1024xf32, #tpu.memory_space<vmem>>) attributes {dimension_semantics = [#tpu.dimension_semantics<parallel>], iteration_bounds = array<i64: 1>, scalar_prefetch = 0 : i64, scratch_operands = 0 : i64, tpu.core_type = #tpu.core_type<tc>, window_params = [{transform_indices = @transform_0, window_bounds = array<i64: 2, 1024>}, {transform_indices = @transform_1, window_bounds = array<i64: 2, 1024>}]} {
    %c0 = arith.constant 0 : index
    %c0_0 = arith.constant 0 : index
    %0 = vector.load %arg1[%c0, %c0_0] : memref<2x1024xf32, #tpu.memory_space<vmem>>, vector<2x1024xf32>
    %cst = arith.constant 5.000000e-01 : f32
    %1 = vector.broadcast %cst : f32 to vector<2x1024xf32>
    %2 = arith.mulf %1, %0 : vector<2x1024xf32>
    %3 = math.tanh %2 : vector<2x1024xf32>
    %cst_1 = arith.constant 5.000000e-01 : f32
    %4 = vector.broadcast %cst_1 : f32 to vector<2x1024xf32>
    %5 = arith.mulf %4, %3 : vector<2x1024xf32>
    %cst_2 = arith.constant 5.000000e-01 : f32
    %6 = vector.broadcast %cst_2 : f32 to vector<2x1024xf32>
    %7 = arith.addf %6, %5 : vector<2x1024xf32>
    %8 = arith.mulf %0, %0 : vector<2x1024xf32>
    %9 = arith.mulf %8, %7 : vector<2x1024xf32>
    %c0_3 = arith.constant 0 : index
    %c0_4 = arith.constant 0 : index
    %10 = vector.load %arg2[%c0_3, %c0_4] : memref<2x1024xf32, #tpu.memory_space<vmem>>, vector<2x1024xf32>
    tpu.vector_store %arg2[%c0_3, %c0_4], %9 {strides = array<i32>} : memref<2x1024xf32, #tpu.memory_space<vmem>>, vector<2x1024xf32>,
    return
  }
  func.func @transform_0(%arg0: i32) -> (i32, i32) {
    %c0_i32 = arith.constant 0 : i32
    %c0_i32_0 = arith.constant 0 : i32
    return %arg0, %c0_i32 : i32, i32
  }
  func.func @transform_1(%arg0: i32) -> (i32, i32) {
    %c0_i32 = arith.constant 0 : i32
    %c0_i32_0 = arith.constant 0 : i32
    return %arg0, %c0_i32 : i32, i32
  }
}

</mosaic_0001>

<llo_original>
// kernel: tpu_custom_call.1
$region0: #{tpu_custom_call.1}
  #allocation0 [shape = 'u32[]', space=smem, size = 0x4, offset = 0x4, fixed_abs, tag = 'smem constant byte address 0x4 - core index']
  #allocation1 [shape = 'u32[72,128]{1,0:T(1,128)}', space=vmem, size = 0x9000, scoped, tag = 'internal scratch']
  %s0 = inlined_call_operand.hbm [shape: f32[2,1024], index: 0, kind: input, shape index: {}]
  %s1 = inlined_call_operand.hbm [shape: f32[2,1024], index: 1, kind: output, shape index: {}]
  %s2 = sld [smem:[#allocation0]]
  $region18: #{tpu_custom_call.1} parent=0
    _
  %s4 = ssub.s32 1, %s2
  %s5 = scalar_select 0, %s4, %s2
  $region1: #{tpu_custom_call.1} parent=0
    #allocation2 [shape = 'u8[8192]{0}', space=vmem, size = 0x2000, scoped, tag = 'input window, operand 0, single buffered']
    #allocation3 [shape = 's32[1]{0}', space=sflag, size = 0x4, scoped, tag = 'scoped memory for tpu_custom_call.1']
    #allocation4 [shape = 's32[1]{0}', space=sflag, size = 0x4, scoped, tag = 'scoped memory for tpu_custom_call.1']
    #allocation5 [shape = 'u8[8192]{0}', space=vmem, size = 0x2000, scoped, tag = 'output window, operand 0, single buffered']
    %6 = vsyncpa [#allocation3], 0
    %7 = vsyncpa [#allocation4], 0
    // Predicated region
    $region2: #{tpu_custom_call.1} parent=1 // pred_check
      _
    $region3: #{tpu_custom_call.1} parent=1 // pred_check_branch
      %9 = sbr.rel (0) target = $region5
    $region4: #{tpu_custom_call.1} parent=1 // pred_region
      %11 = vsyncadd [#allocation3], 0
      %s13 = sshll.u32 %s0, 4
      %s14 = int_to_ptr.hbm [resolvable:$true] %s13
      %s15 = sshll.u32 [#allocation2], 4
      %s16 = int_to_ptr.vmem [resolvable:$true] %s15
      %18 = dma.hbm_to_vmem [thread:$0]  %s14, 256, %s16, [#allocation3]
    $region5: #{tpu_custom_call.1} parent=1 // pred_fallthru
      _
    // Predicated region
    $region6: #{tpu_custom_call.1} parent=1 // pred_check
      _
    $region7: #{tpu_custom_call.1} parent=1 // pred_check_branch
      %20 = sbr.rel (0) target = $region9
    $region8: #{tpu_custom_call.1} parent=1 // pred_region
      %22 = dma.done [#allocation3], 256
    $region9: #{tpu_custom_call.1} parent=1 // pred_fallthru
      _
    %v23 = vld [vmem:[#allocation2] sm:$0xff]
    %v24 = vld [vmem:[#allocation2 + $0x8] sm:$0xff]
    %v25 = vmul.f32 %v23, 0.5
    %v26 = vmul.f32 %v24, 0.5
    %v27 = vtanh.pop %v25
    %v28 = vtanh.pop %v26
    %v29 = vmul.f32 %v27, 0.5
    %v30 = vmul.f32 %v28, 0.5
    %v31 = vadd.f32 %v29, 0.5
    %v32 = vadd.f32 %v30, 0.5
    %v33 = vmul.f32 %v23, %v23
    %v34 = vmul.f32 %v24, %v24
    %v35 = vmul.f32 %v33, %v31
    %v36 = vmul.f32 %v34, %v32
    %37 = vst [vmem:[#allocation5] sm:$0xff] %v35
    %38 = vst [vmem:[#allocation5 + $0x8] sm:$0xff] %v36
    // Predicated region
    $region10: #{tpu_custom_call.1} parent=1 // pred_check
      _
    $region11: #{tpu_custom_call.1} parent=1 // pred_check_branch
      %40 = sbr.rel (0) target = $region13
    $region12: #{tpu_custom_call.1} parent=1 // pred_region
      %42 = vsyncadd [#allocation4], 0
      %s44 = sshll.u32 [#allocation5], 4
      %s45 = int_to_ptr.vmem [resolvable:$true] %s44
      %s46 = sshll.u32 %s1, 4
      %s47 = int_to_ptr.hbm [resolvable:$true] %s46
      %49 = dma.vmem_to_hbm [thread:$0]  %s45, 256, %s47, [#allocation4]
    $region13: #{tpu_custom_call.1} parent=1 // pred_fallthru
      _
    // Predicated region
    $region14: #{tpu_custom_call.1} parent=1 // pred_check
      _
    $region15: #{tpu_custom_call.1} parent=1 // pred_check_branch
      %51 = sbr.rel (0) target = $region17
    $region16: #{tpu_custom_call.1} parent=1 // pred_region
      %53 = dma.done [#allocation4], 256
    $region17: #{tpu_custom_call.1} parent=1 // pred_fallthru
      _
    %54 = vsyncpa [#allocation3], 1
    %55 = vsyncpa [#allocation4], 1

</llo_original>
